<compile_context>
chip_gen: v6e
topology: v6e:2x2x1
jax: 0.10.0
libtpu: 0.0.40
codegen_flags: <defaults>
</compile_context>

<pallas_src>
import functools

import jax
import jax.numpy as jnp
from jax.experimental import pallas as pl
from jax.experimental.pallas import tpu as pltpu


# ---------------------------------------------------------------------------
# Pallas kernel: o = act( (W @ X) * scale + bias ), bf16 in, f32 acc, bf16 out
# ---------------------------------------------------------------------------
def _conv1x1t_kernel(x_ref, w_ref, s_ref, b_ref, o_ref, *, act):
    # x_ref: (K, tn) bf16   w_ref: (c2, K) bf16   s_ref/b_ref: (c2, 1) f32
    y = jnp.dot(w_ref[...], x_ref[...], preferred_element_type=jnp.float32)
    y = y * s_ref[...] + b_ref[...]                  # BN (eval) in f32 epilogue
    if act == "hardswish":                           # torch.nn.Hardswish
        y = y * jnp.clip(y + 3.0, 0.0, 6.0) * (1.0 / 6.0)
    o_ref[...] = y.astype(o_ref.dtype)


def fused_conv1x1_t(xk, w2, scale, bias, *, act="hardswish", tn=8192):
    """o[n] = act(w2 @ xk[n] * scale + bias), tiled over the spatial (lane) axis.

    xk   : (N, K, L)  bf16 channels-first activation slab (L = Ho*Wo)
    w2   : (c2, K)    bf16 conv weight (BN scale NOT folded in)
    scale: (c2, 1)    f32 BN scale  gamma / sqrt(var + eps)
    bias : (c2, 1)    f32 BN shift  beta - mean * scale
    returns (N, c2, L) bf16
    """
    N, K, L = xk.shape
    c2 = w2.shape[0]

    # --- spatial tile selection (block last dim: multiple of 128 or full dim) ---
    if L <= tn:
        tn_eff = L
        # keep >=2 grid steps for megacore sharding when the batch axis is trivial
        if N == 1 and L >= 256 and L % 256 == 0:
            tn_eff = L // 2
        L_pad = L
    else:
        tn_eff = tn                                   # 8192: multiple of 128
        L_pad = int(pl.cdiv(L, tn_eff)) * tn_eff
        if L_pad != L:
            xk = jnp.pad(xk, ((0, 0), (0, 0), (0, L_pad - L)))
    grid = (N, L_pad // tn_eff)

    # --- VMEM budget: double-buffered x/o tiles + resident weight/scale/bias ---
    x_bytes = K * tn_eff * xk.dtype.itemsize
    o_bytes = c2 * tn_eff * 2                         # bf16 output tile
    w_bytes = c2 * K * w2.dtype.itemsize
    c_bytes = 2 * c2 * 4
    vmem_limit = int(min(max(2 * (x_bytes + o_bytes) + w_bytes + c_bytes
                             + (4 << 20), 16 << 20), 48 << 20))

    cost = pl.CostEstimate(
        flops=2 * N * L_pad * K * c2,
        transcendentals=0,
        bytes_accessed=N * L_pad * K * xk.dtype.itemsize
                       + N * L_pad * c2 * 2 + w_bytes + c_bytes)

    out = pl.pallas_call(
        functools.partial(_conv1x1t_kernel, act=act),
        out_shape=jax.ShapeDtypeStruct((N, c2, L_pad), jnp.bfloat16),
        grid=grid,
        in_specs=[
            pl.BlockSpec((None, K, tn_eff), lambda n, j: (n, 0, j)),  # activations
            pl.BlockSpec((c2, K), lambda n, j: (0, 0)),               # resident W
            pl.BlockSpec((c2, 1), lambda n, j: (0, 0)),               # resident scale
            pl.BlockSpec((c2, 1), lambda n, j: (0, 0)),               # resident bias
        ],
        out_specs=pl.BlockSpec((None, c2, tn_eff), lambda n, j: (n, 0, j)),
        compiler_params=pltpu.CompilerParams(
            dimension_semantics=("parallel", "parallel"),
            vmem_limit_bytes=vmem_limit),
        cost_estimate=cost,
    )(xk, w2, scale, bias)

    return out[:, :, :L] if L_pad != L else out


# ---------------------------------------------------------------------------
# Focus forward (wrapper: bf16 cast + blocked space-to-depth + kernel call)
# ---------------------------------------------------------------------------
def focus_forward(x_nchw, conv_w, gamma, beta, mean, var, *, eps=1e-5,
                  act=True):
    N, c1, H, W = x_nchw.shape
    assert H % 2 == 0 and W % 2 == 0, "Focus needs even spatial dims"
    Ho, Wo = H // 2, W // 2
    L = Ho * Wo
    c2 = conv_w.shape[0]
    K = 4 * c1

    # Cast first, then a single reshape->transpose->reshape space-to-depth.
    # Axis order (N, wp, hp, c, ho, wo) reproduces torch.cat's channel order
    # [(h even,w even),(h odd,w even),(h even,w odd),(h odd,w odd)] exactly.
    xb = x_nchw.astype(jnp.bfloat16)
    x6 = xb.reshape(N, c1, Ho, 2, Wo, 2)              # (N, c, ho, hp, wo, wp)
    xk = jnp.transpose(x6, (0, 5, 3, 1, 2, 4)).reshape(N, K, L)

    # BN (eval form) as an f32 epilogue: y*scale + bias.  Weights stay unscaled
    # in bf16 so the BN scale does not amplify bf16 quantization error.
    scale = (gamma / jnp.sqrt(var + eps)).astype(jnp.float32)       # (c2,)
    bias = (beta.astype(jnp.float32) - mean.astype(jnp.float32) * scale)
    w2 = conv_w[:, :, 0, 0].astype(jnp.bfloat16)                    # (c2, K)

    out = fused_conv1x1_t(xk, w2, scale.reshape(c2, 1), bias.reshape(c2, 1),
                          act="hardswish" if act else "none")
    return out.reshape(N, c2, Ho, Wo)                 # already channels-first


# ---------------------------------------------------------------------------
# Pure-JAX NCHW reference (mirrors the PyTorch forward, BN in eval form, f32)
# ---------------------------------------------------------------------------
def reference_forward(x, conv_w, gamma, beta, mean, var, *, eps=1e-5,
                      act=True):
    xs = jnp.concatenate([x[..., ::2, ::2], x[..., 1::2, ::2],
                          x[..., ::2, 1::2], x[..., 1::2, 1::2]], axis=1)
    y = jax.lax.conv_general_dilated(
        xs, conv_w, (1, 1), [(0, 0), (0, 0)],
        dimension_numbers=("NCHW", "OIHW", "NCHW"))
    g, b, m, v = (t[None, :, None, None] for t in (gamma, beta, mean, var))
    y = (y - m) / jnp.sqrt(v + eps) * g + b
    if act:
        y = y * jnp.clip(y + 3.0, 0.0, 6.0) / 6.0
    return y


if __name__ == "__main__":
    key = jax.random.PRNGKey(0)
    kx, kw, kg, kb, km, kv = jax.random.split(key, 6)

    # Small shapes consistent with Focus: c1=4 -> conv over 4*c1=16 channels.
    N, c1, H, W, c2 = 2, 4, 16, 16, 32
    x = jax.random.normal(kx, (N, c1, H, W), jnp.float32)
    conv_w = 0.1 * jax.random.normal(kw, (c2, 4 * c1, 1, 1), jnp.float32)
    gamma = 1.0 + 0.1 * jax.random.normal(kg, (c2,), jnp.float32)
    beta = 0.1 * jax.random.normal(kb, (c2,), jnp.float32)
    mean = 0.1 * jax.random.normal(km, (c2,), jnp.float32)
    var = 0.5 + 0.1 * jnp.abs(jax.random.normal(kv, (c2,), jnp.float32))

    out = focus_forward(x, conv_w, gamma, beta, mean, var)
    out = jax.block_until_ready(out)

    ref = reference_forward(x, conv_w, gamma, beta, mean, var)
    assert out.shape == (N, c2, H // 2, W // 2)
    max_err = float(jnp.max(jnp.abs(out.astype(jnp.float32) - ref)))
    # bf16 MXU inputs + bf16 output vs f32 reference -> bf16-level tolerance.
    assert jnp.allclose(out.astype(jnp.float32), ref, atol=3e-2, rtol=3e-2), max_err

    print("KERNEL_OK")
</pallas_src>

<mosaic_0001>
module attributes {stable_mosaic.version = 11 : i64} {
  func.func @_conv1x1t_kernel(%arg0: i32, %arg1: i32, %arg2: memref<1x16x64xbf16, #tpu.memory_space<vmem>>, %arg3: memref<32x16xbf16, #tpu.memory_space<vmem>>, %arg4: memref<32x1xf32, #tpu.memory_space<vmem>>, %arg5: memref<32x1xf32, #tpu.memory_space<vmem>>, %arg6: memref<1x32x64xbf16, #tpu.memory_space<vmem>>) attributes {dimension_semantics = [#tpu.dimension_semantics<parallel>, #tpu.dimension_semantics<parallel>], iteration_bounds = array<i64: 2, 1>, scalar_prefetch = 0 : i64, scratch_operands = 0 : i64, tpu.core_type = #tpu.core_type<tc>, window_params = [{transform_indices = @transform_0, window_bounds = array<i64: 1, 16, 64>}, {pipeline_mode = #tpu.pipeline_mode<synchronous>, transform_indices = @transform_1, window_bounds = array<i64: 32, 16>}, {pipeline_mode = #tpu.pipeline_mode<synchronous>, transform_indices = @transform_2, window_bounds = array<i64: 32, 1>}, {pipeline_mode = #tpu.pipeline_mode<synchronous>, transform_indices = @transform_3, window_bounds = array<i64: 32, 1>}, {transform_indices = @transform_4, window_bounds = array<i64: 1, 32, 64>}]} {
    %c0 = arith.constant 0 : index
    %c0_0 = arith.constant 0 : index
    %0 = vector.load %arg3[%c0, %c0_0] : memref<32x16xbf16, #tpu.memory_space<vmem>>, vector<32x16xbf16>
    %c0_1 = arith.constant 0 : index
    %c0_2 = arith.constant 0 : index
    %c0_3 = arith.constant 0 : index
    %1 = vector.load %arg2[%c0_1, %c0_2, %c0_3] : memref<1x16x64xbf16, #tpu.memory_space<vmem>>, vector<1x16x64xbf16>
    %2 = vector.shape_cast %1 : vector<1x16x64xbf16> to vector<16x64xbf16>
    %cst = arith.constant dense<0.000000e+00> : vector<32x64xf32>
    %3 = tpu.matmul %0, %2, %cst {dimension_numbers = #tpu.dot_dimension_numbers<[1], [0], [0], [1], [0, 0, 1, 1], [], []>} : vector<32x16xbf16>, vector<16x64xbf16>, vector<32x64xf32> -> vector<32x64xf32>
    %c0_4 = arith.constant 0 : index
    %c0_5 = arith.constant 0 : index
    %4 = vector.load %arg4[%c0_4, %c0_5] : memref<32x1xf32, #tpu.memory_space<vmem>>, vector<32x1xf32>
    %5 = vector.broadcast %4 : vector<32x1xf32> to vector<32x64xf32>
    %6 = arith.mulf %3, %5 : vector<32x64xf32>
    %c0_6 = arith.constant 0 : index
    %c0_7 = arith.constant 0 : index
    %7 = vector.load %arg5[%c0_6, %c0_7] : memref<32x1xf32, #tpu.memory_space<vmem>>, vector<32x1xf32>
    %8 = vector.broadcast %7 : vector<32x1xf32> to vector<32x64xf32>
    %9 = arith.addf %6, %8 : vector<32x64xf32>
    %cst_8 = arith.constant 3.000000e+00 : f32
    %10 = vector.broadcast %cst_8 : f32 to vector<32x64xf32>
    %11 = arith.addf %9, %10 : vector<32x64xf32>
    %cst_9 = arith.constant 0.000000e+00 : f32
    %cst_10 = arith.constant 6.000000e+00 : f32
    %12 = vector.broadcast %cst_9 : f32 to vector<32x64xf32>
    %13 = arith.maximumf %12, %11 : vector<32x64xf32>
    %14 = vector.broadcast %cst_10 : f32 to vector<32x64xf32>
    %15 = arith.minimumf %14, %13 : vector<32x64xf32>
    %16 = arith.mulf %9, %15 : vector<32x64xf32>
    %cst_11 = arith.constant 0.166666672 : f32
    %17 = vector.broadcast %cst_11 : f32 to vector<32x64xf32>
    %18 = arith.mulf %16, %17 : vector<32x64xf32>
    %19 = arith.truncf %18 : vector<32x64xf32> to vector<32x64xbf16>
    %c0_12 = arith.constant 0 : index
    %c0_13 = arith.constant 0 : index
    %c0_14 = arith.constant 0 : index
    %20 = vector.load %arg6[%c0_12, %c0_13, %c0_14] : memref<1x32x64xbf16, #tpu.memory_space<vmem>>, vector<1x32x64xbf16>
    %21 = vector.shape_cast %20 : vector<1x32x64xbf16> to vector<32x64xbf16>
    %22 = vector.shape_cast %19 : vector<32x64xbf16> to vector<1x32x64xbf16>
    tpu.vector_store %arg6[%c0_12, %c0_13, %c0_14], %22 {strides = array<i32>} : memref<1x32x64xbf16, #tpu.memory_space<vmem>>, vector<1x32x64xbf16>,
    return
  }
  func.func @transform_0(%arg0: i32, %arg1: i32) -> (i32, i32, i32) {
    %c0_i32 = arith.constant 0 : i32
    %c0_i32_0 = arith.constant 0 : i32
    return %arg0, %c0_i32, %arg1 : i32, i32, i32
  }
  func.func @transform_1(%arg0: i32, %arg1: i32) -> (i32, i32) {
    %c0_i32 = arith.constant 0 : i32
    %c0_i32_0 = arith.constant 0 : i32
    %c0_i32_1 = arith.constant 0 : i32
    return %c0_i32, %c0_i32_0 : i32, i32
  }
  func.func @transform_2(%arg0: i32, %arg1: i32) -> (i32, i32) {
    %c0_i32 = arith.constant 0 : i32
    %c0_i32_0 = arith.constant 0 : i32
    %c0_i32_1 = arith.constant 0 : i32
    return %c0_i32, %c0_i32_0 : i32, i32
  }
  func.func @transform_3(%arg0: i32, %arg1: i32) -> (i32, i32) {
    %c0_i32 = arith.constant 0 : i32
    %c0_i32_0 = arith.constant 0 : i32
    %c0_i32_1 = arith.constant 0 : i32
    return %c0_i32, %c0_i32_0 : i32, i32
  }
  func.func @transform_4(%arg0: i32, %arg1: i32) -> (i32, i32, i32) {
    %c0_i32 = arith.constant 0 : i32
    %c0_i32_0 = arith.constant 0 : i32
    return %arg0, %c0_i32, %arg1 : i32, i32, i32
  }
}

</mosaic_0001>

<llo_original>
// kernel: tpu_custom_call.1
$region0: #{tpu_custom_call.1}
  #allocation0 [shape = 'u32[]', space=smem, size = 0x4, offset = 0x4, fixed_abs, tag = 'smem constant byte address 0x4 - core index']
  #allocation1 [shape = 'u32[144,128]{1,0:T(1,128)}', space=vmem, size = 0x12000, scoped, tag = 'internal scratch']
  %s0 = inlined_call_operand.vmem [shape: bf16[2,16,64], index: 0, kind: input, shape index: {}]
  %s1 = inlined_call_operand.vmem [shape: bf16[32,16], index: 1, kind: input, shape index: {}]
  %s2 = inlined_call_operand.vmem [shape: f32[32,1], index: 2, kind: input, shape index: {}]
  %s3 = inlined_call_operand.vmem [shape: f32[32,1], index: 3, kind: input, shape index: {}]
  %s4 = inlined_call_operand.hbm [shape: bf16[2,32,64], index: 4, kind: output, shape index: {}]
  %s5 = sld [smem:[#allocation0]]
  $region49: #{tpu_custom_call.1} parent=0
    _
  %s7 = ssub.s32 1, %s5
  %s8 = scalar_select 0, %s7, %s5
  $region1: #{tpu_custom_call.1} parent=0
    #allocation2 [shape = 'u8[16384]{0}', space=vmem, size = 0x4000, scoped, tag = 'output window, operand 0']
    #allocation3 [shape = 's32[2]{0}', space=sflag, size = 0x8, scoped, tag = 'scoped memory for tpu_custom_call.1']
    %9 = vsyncpa [#allocation3], 0
    %s10 = scalar_lea.sflag [#allocation3], 1
    %11 = vsyncpa %s10, 0
    loop: start=0, step=1, limit=4
    $region2: #{tpu_custom_call.1} parent=1 // loop_pre_header
      _
    $region3: #{tpu_custom_call.1} parent=1 // loop_header
      %s13 = sphi 0, %s17
      %p14 = scmp.ge.s32.totalorder %s13, 4
      %s20 = sphi 0, %s32
      %s21 = sphi 0, %s28
      %s22 = sphi 0, %s20
      %s23 = sphi 0, %s21
      %s24 = sphi 0, %s22
      %s25 = sphi 0, %s23
      %s37 = sphi 0, %s39
      %s40 = sphi 0, %s37
      %s41 = sphi 0, %s40
      %s57 = sphi 0, %s41
      %s61 = sphi 0, %s61
      %s63 = sphi 0, %s61
      %s64 = sphi 0, %s63
      %s78 = sphi 0, %s64
      %s82 = sphi 0, %s82
      %s84 = sphi 0, %s82
      %s85 = sphi 0, %s84
      %s99 = sphi 0, %s85
      %s103 = sphi 0, %s103
      %s105 = sphi 0, %s103
      %s106 = sphi 0, %s105
      %s120 = sphi 0, %s106
      %s128 = sphi 0, %s130
      %s131 = sphi 0, %s128
      %s132 = sphi 0, %s131
      %s148 = sphi 0, %s132
    $region4: #{tpu_custom_call.1} parent=1 // loop_header_branch
      %16 = sbr.rel (%p14) target = $region8
    $region5: #{tpu_custom_call.1} parent=1 // loop_body
      %s18 = ssub.s32 %s13, 1
      %s19 = ssub.s32 %s13, 2
      %s26 = sadd.s32 1, %s21
      %p27 = scmp.ge.s32.totalorder %s26, 1
      %s28 = scalar_select %p27, 0, %s26
      %s29 = sadd.s32 1, %s20
      %s30 = scalar_select %p27, %s29, %s20
      %p31 = scmp.ge.s32.totalorder %s30, 2
      %s32 = scalar_select %p31, 0, %s30
      %s33 = ssub.s32 %s20, %s32
      %s34 = ssub.s32 %s21, %s28
      %s35 = sor.u32 %s33, %s34
      %p36 = scmp.eq.s32.totalorder %s35, 0
      %s38 = sadd.s32 %s37, 1
      %s39 = scalar_select %p36, %s37, %s38
      %p42 = pneg %p36
      %p43 = scmp.eq.s32.totalorder %s13, 1
      %p44 = por %p42, %p43
      %p45 = scmp.ne.s32.totalorder %s37, %s40
      %p46 = scmp.eq.s32.totalorder %s13, 0
      %p47 = por %p45, %p46
      %p48 = scmp.ne.s32.totalorder %s37, %s40
      %p49 = scmp.eq.s32.totalorder %s18, 1
      %p50 = por %p48, %p49
      %p51 = scmp.ne.s32.totalorder %s40, %s41
      %p52 = scmp.eq.s32.totalorder %s18, 0
      %p53 = por %p51, %p52
      %p54 = scmp.ne.s32.totalorder %s40, %s41
      %p55 = scmp.eq.s32.totalorder %s19, 1
      %p56 = por %p54, %p55
      %p58 = scmp.ne.s32.totalorder %s41, %s57
      %p59 = scmp.eq.s32.totalorder %s19, 0
      %p60 = por %p58, %p59
      %s62 = sadd.s32 %s61, 1
      %p65 = scmp.eq.s32.totalorder %s13, 1
      %p66 = scmp.ne.s32.totalorder %s61, %s63
      %p67 = scmp.eq.s32.totalorder %s13, 0
      %p68 = por %p66, %p67
      %p69 = scmp.ne.s32.totalorder %s61, %s63
      %p70 = scmp.eq.s32.totalorder %s18, 1
      %p71 = por %p69, %p70
      %p72 = scmp.ne.s32.totalorder %s63, %s64
      %p73 = scmp.eq.s32.totalorder %s18, 0
      %p74 = por %p72, %p73
      %p75 = scmp.ne.s32.totalorder %s63, %s64
      %p76 = scmp.eq.s32.totalorder %s19, 1
      %p77 = por %p75, %p76
      %p79 = scmp.ne.s32.totalorder %s64, %s78
      %p80 = scmp.eq.s32.totalorder %s19, 0
      %p81 = por %p79, %p80
      %s83 = sadd.s32 %s82, 1
      %p86 = scmp.eq.s32.totalorder %s13, 1
      %p87 = scmp.ne.s32.totalorder %s82, %s84
      %p88 = scmp.eq.s32.totalorder %s13, 0
      %p89 = por %p87, %p88
      %p90 = scmp.ne.s32.totalorder %s82, %s84
      %p91 = scmp.eq.s32.totalorder %s18, 1
      %p92 = por %p90, %p91
      %p93 = scmp.ne.s32.totalorder %s84, %s85
      %p94 = scmp.eq.s32.totalorder %s18, 0
      %p95 = por %p93, %p94
      %p96 = scmp.ne.s32.totalorder %s84, %s85
      %p97 = scmp.eq.s32.totalorder %s19, 1
      %p98 = por %p96, %p97
      %p100 = scmp.ne.s32.totalorder %s85, %s99
      %p101 = scmp.eq.s32.totalorder %s19, 0
      %p102 = por %p100, %p101
      %s104 = sadd.s32 %s103, 1
      %p107 = scmp.eq.s32.totalorder %s13, 1
      %p108 = scmp.ne.s32.totalorder %s103, %s105
      %p109 = scmp.eq.s32.totalorder %s13, 0
      %p110 = por %p108, %p109
      %p111 = scmp.ne.s32.totalorder %s103, %s105
      %p112 = scmp.eq.s32.totalorder %s18, 1
      %p113 = por %p111, %p112
      %p114 = scmp.ne.s32.totalorder %s105, %s106
      %p115 = scmp.eq.s32.totalorder %s18, 0
      %p116 = por %p114, %p115
      %p117 = scmp.ne.s32.totalorder %s105, %s106
      %p118 = scmp.eq.s32.totalorder %s19, 1
      %p119 = por %p117, %p118
      %p121 = scmp.ne.s32.totalorder %s106, %s120
      %p122 = scmp.eq.s32.totalorder %s19, 0
      %p123 = por %p121, %p122
      %s124 = ssub.s32 %s20, %s32
      %s125 = ssub.s32 %s21, %s28
      %s126 = sor.u32 %s124, %s125
      %p127 = scmp.eq.s32.totalorder %s126, 0
      %s129 = sadd.s32 %s128, 1
      %s130 = scalar_select %p127, %s128, %s129
      %p133 = pneg %p127
      %p134 = scmp.eq.s32.totalorder %s13, 1
      %p135 = por %p133, %p134
      %p136 = scmp.ne.s32.totalorder %s128, %s131
      %p137 = scmp.eq.s32.totalorder %s13, 0
      %p138 = por %p136, %p137
      %p139 = scmp.ne.s32.totalorder %s128, %s131
      %p140 = scmp.eq.s32.totalorder %s18, 1
      %p141 = por %p139, %p140
      %p142 = scmp.ne.s32.totalorder %s131, %s132
      %p143 = scmp.eq.s32.totalorder %s18, 0
      %p144 = por %p142, %p143
      %p145 = scmp.ne.s32.totalorder %s131, %s132
      %p146 = scmp.eq.s32.totalorder %s19, 1
      %p147 = por %p145, %p146
      %p149 = scmp.ne.s32.totalorder %s132, %s148
      %p150 = scmp.eq.s32.totalorder %s19, 0
      %p151 = por %p149, %p150
      %p152 = scmp.le.s32.totalorder 1, %s13
      %p153 = scmp.lt.s32.totalorder %s13, 3
      %p154 = pnand %p152, %p153
      %p155 = pneg %p154
      // Predicated region
      $region9: #{tpu_custom_call.1} parent=5 // pred_check
        _
      $region10: #{tpu_custom_call.1} parent=5 // pred_check_branch
        %157 = sbr.rel (%p154) target = $region12
      $region11: #{tpu_custom_call.1} parent=5 // pred_region
        %s158 = ssub.s32 %s13, 1
        // Predicated region
        $region13: #{tpu_custom_call.1} parent=11 // pred_check
          %p159 = pneg %p74
        $region14: #{tpu_custom_call.1} parent=11 // pred_check_branch
          %161 = sbr.rel (%p159) target = $region16
        $region15: #{tpu_custom_call.1} parent=11 // pred_region
          _
        $region16: #{tpu_custom_call.1} parent=11 // pred_fallthru
          _
        // Predicated region
        $region17: #{tpu_custom_call.1} parent=11 // pred_check
          %p162 = pneg %p95
        $region18: #{tpu_custom_call.1} parent=11 // pred_check_branch
          %164 = sbr.rel (%p162) target = $region20
        $region19: #{tpu_custom_call.1} parent=11 // pred_region
          _
        $region20: #{tpu_custom_call.1} parent=11 // pred_fallthru
          _
        // Predicated region
        $region21: #{tpu_custom_call.1} parent=11 // pred_check
          %p165 = pneg %p116
        $region22: #{tpu_custom_call.1} parent=11 // pred_check_branch
          %167 = sbr.rel (%p165) target = $region24
        $region23: #{tpu_custom_call.1} parent=11 // pred_region
          _
        $region24: #{tpu_custom_call.1} parent=11 // pred_fallthru
          _
      $region12: #{tpu_custom_call.1} parent=5 // pred_fallthru
        _
      %p168 = scmp.lt.s32.totalorder %s13, 2
      // Predicated region
      $region25: #{tpu_custom_call.1} parent=5 // pred_check
        %p169 = pneg %p168
      $region26: #{tpu_custom_call.1} parent=5 // pred_check_branch
        %171 = sbr.rel (%p169) target = $region28
      $region27: #{tpu_custom_call.1} parent=5 // pred_region
        // Predicated region
        $region29: #{tpu_custom_call.1} parent=27 // pred_check
          %p172 = pneg %p47
        $region30: #{tpu_custom_call.1} parent=27 // pred_check_branch
          %174 = sbr.rel (%p172) target = $region32
        $region31: #{tpu_custom_call.1} parent=27 // pred_region
          %p175 = scmp.lt.s32.totalorder %s20, 1
          %s176 = scalar_select %p175, %s20, 1
          %p177 = scmp.lt.s32.totalorder %s21, 0
          %s178 = scalar_select %p177, %s21, 0
          %s179 = smul.addr %s176, 2
          %s180 = sadd.s32 %s178, %s179
          %s181 = smul.addr %s180, 4
          %s182 = scalar_lea.vmem %s0, %s181
        $region32: #{tpu_custom_call.1} parent=27 // pred_fallthru
          _
      $region28: #{tpu_custom_call.1} parent=5 // pred_fallthru
        _
      %p183 = scmp.le.s32.totalorder 1, %s13
      %p184 = scmp.lt.s32.totalorder %s13, 3
      %p185 = pnand %p183, %p184
      %p186 = pneg %p185
      // Predicated region
      $region33: #{tpu_custom_call.1} parent=5 // pred_check
        _
      $region34: #{tpu_custom_call.1} parent=5 // pred_check_branch
        %188 = sbr.rel (%p185) target = $region36
      $region35: #{tpu_custom_call.1} parent=5 // pred_region
        %s189 = ssub.s32 %s13, 1
        %p190 = scmp.lt.s32.totalorder %s22, 1
        %s191 = scalar_select %p190, %s22, 1
        %p192 = scmp.lt.s32.totalorder %s23, 0
        %s193 = scalar_select %p192, %s23, 0
        %s194 = smul.addr %s191, 2
        %s195 = sadd.s32 %s193, %s194
        %s196 = smul.addr %s195, 4
        %s197 = scalar_lea.vmem %s0, %s196
        %p198 = pneg %p53
        %p199 = pneg %p50
        %p200 = pneg %p74
        %p201 = pneg %p71
        %p202 = pneg %p95
        %p203 = pneg %p92
        %p204 = pneg %p116
        %p205 = pneg %p113
        %p206 = pneg %p144
        %p207 = pneg %p141
        %s208 = sand.u32 %s131, 1
        %s209 = scalar_lea.sflag [#allocation3], %s208
        %s210 = sand.u32 %s131, 1
        %s211 = smul.addr %s210, 16
        %s212 = scalar_lea.vmem [#allocation2], %s211
        %p213 = scmp.lt.s32.totalorder %s22, 1
        %s214 = scalar_select %p213, %s22, 1
        %p215 = scmp.lt.s32.totalorder %s23, 0
        %s216 = scalar_select %p215, %s23, 0
        %s217 = smul.addr %s214, 2
        %s218 = sadd.s32 %s216, %s217
        %s219 = smul.addr %s218, 4
        %s220 = scalar_lea.vmem %s0, %s219
        %v222 = vld [vmem:[%s1] sm:$0xf]
        %v223 = vld [vmem:[%s1 + $0x4] sm:$0xf]
        %v224 = vld [vmem:[%s1 + $0x8] sm:$0xf]
        %v225 = vld [vmem:[%s1 + $0xc] sm:$0xf]
        %v226 = vld [vmem:[%s220] sm:$0xf]
        %v227 = vld [vmem:[%s220 + $0x4] sm:$0xf]
        %v232 = vunpack.c.l.b16 %v222
        %v233 = vunpack.c.l.b16 %v223
        %v234 = vunpack.c.l.b16 %v224
        %v235 = vunpack.c.l.b16 %v225
        %v236 = vpack.c.b16 %v233, %v232
        %v237 = vpack.c.b16 %v235, %v234
        %v240 = vunpack.c.l.b16 %v226
        %v241 = vunpack.c.l.b16 %v227
        %v242 = vpack.c.b16 %v241, %v240
        %vm244 = vcmask 130048
        %v246 = vsel %vm244, %v236, 0
        %v249 = vsel %vm244, %v237, 0
        %251 = vmatprep.subr.bf16.mxu0 0
        %252 = vmatpush1.bf16.msra.mxu0 0
        %253 = vmatprep.subr.bf16.mxu0 0
        %254 = vmatpush1.bf16.msra.mxu0 0
        %255 = vmatprep.subr.bf16.mxu0 0
        %256 = vmatpush1.bf16.msra.mxu0 0
        %257 = vmatprep.subr.bf16.mxu0 0
        %258 = vmatpush1.bf16.msra.mxu0 0
        %259 = vmatprep.subr.bf16.mxu0 0
        %260 = vmatpush1.bf16.msra.mxu0 0
        %261 = vmatprep.subr.bf16.mxu0 0
        %262 = vmatpush1.bf16.msra.mxu0 0
        %263 = vmatprep.subr.bf16.mxu0 0
        %264 = vmatpush1.bf16.msra.mxu0 0
        %265 = vmatprep.subr.bf16.mxu0 0
        %266 = vmatpush1.bf16.msra.mxu0 %v242
        %267 = vmatprep.subr.bf16.mxu0 0
        %268 = vmatpush2.bf16.msra.mxu0 0
        %269 = vmatprep.subr.bf16.mxu0 0
        %270 = vmatpush2.bf16.msra.mxu0 0
        %271 = vmatprep.subr.bf16.mxu0 0
        %272 = vmatpush2.bf16.msra.mxu0 0
        %273 = vmatprep.subr.bf16.mxu0 0
        %274 = vmatpush2.bf16.msra.mxu0 0
        %275 = vmatprep.subr.bf16.mxu0 0
        %276 = vmatpush2.bf16.msra.mxu0 0
        %277 = vmatprep.subr.bf16.mxu0 0
        %278 = vmatpush2.bf16.msra.mxu0 0
        %279 = vmatprep.subr.bf16.mxu0 0
        %280 = vmatpush2.bf16.msra.mxu0 0
        %281 = vmatprep.subr.bf16.mxu0 0
        %282 = vmatpush2.bf16.msra.mxu0 0
        %283 = vmatprep.mubr.bf16.mxu0 0
        %284 = vmatmul.mubr.bf16.gmra.mxu0 %v246
        %v285 = vpop.f32.mrf.mxu0
        %v286 = vadd.f32 0.0, %v285
        %v287 = vpop.f32.mrf.mxu0
        %v288 = vpop.f32.mrf.mxu0
        %v289 = vadd.f32 0.0, %v288
        %v290 = vpop.f32.mrf.mxu0
        %291 = vmatprep.mubr.bf16.mxu0 0
        %292 = vmatmul.mubr.bf16.gmra.mxu0 %v249
        %v293 = vpop.f32.mrf.mxu0
        %v294 = vadd.f32 0.0, %v293
        %v295 = vpop.f32.mrf.mxu0
        %v296 = vpop.f32.mrf.mxu0
        %v297 = vadd.f32 0.0, %v296
        %v298 = vpop.f32.mrf.mxu0
        %299 = vdwg.mxu0
        %v300 = vld [vmem:[%s2] sm:$0xff]
        %v301 = vld [vmem:[%s2 + $0x8] sm:$0xff]
        %v302 = vld [vmem:[%s2 + $0x10] sm:$0xff]
        %v303 = vld [vmem:[%s2 + $0x18] sm:$0xff]
        %305 = vset.pattern.permute.xlu0 0
        %306 = vperm.xlu0 %305, %v300
        %v307 = vpop.permute.xlu0 %306
        %310 = vset.pattern.permute.xlu0 0
        %311 = vperm.xlu0 %310, %v301
        %v312 = vpop.permute.xlu0 %311
        %315 = vset.pattern.permute.xlu0 0
        %316 = vperm.xlu0 %315, %v302
        %v317 = vpop.permute.xlu0 %316
        %320 = vset.pattern.permute.xlu0 0
        %321 = vperm.xlu0 %320, %v303
        %v322 = vpop.permute.xlu0 %321
        %v324 = vmul.f32 %v286, %v307
        %v325 = vmul.f32 %v289, %v312
        %v326 = vmul.f32 %v294, %v317
        %v327 = vmul.f32 %v297, %v322
        %v328 = vld [vmem:[%s3] sm:$0xff]
        %v329 = vld [vmem:[%s3 + $0x8] sm:$0xff]
        %v330 = vld [vmem:[%s3 + $0x10] sm:$0xff]
        %v331 = vld [vmem:[%s3 + $0x18] sm:$0xff]
        %333 = vset.pattern.permute.xlu0 0
        %334 = vperm.xlu0 %333, %v328
        %v335 = vpop.permute.xlu0 %334
        %338 = vset.pattern.permute.xlu0 0
        %339 = vperm.xlu0 %338, %v329
        %v340 = vpop.permute.xlu0 %339
        %343 = vset.pattern.permute.xlu0 0
        %344 = vperm.xlu0 %343, %v330
        %v345 = vpop.permute.xlu0 %344
        %348 = vset.pattern.permute.xlu0 0
        %349 = vperm.xlu0 %348, %v331
        %v350 = vpop.permute.xlu0 %349
        %v352 = vadd.f32 %v324, %v335
        %v353 = vadd.f32 %v325, %v340
        %v354 = vadd.f32 %v326, %v345
        %v355 = vadd.f32 %v327, %v350
        %v356 = vadd.f32 %v352, 3.0
        %v357 = vadd.f32 %v353, 3.0
        %v358 = vadd.f32 %v354, 3.0
        %v359 = vadd.f32 %v355, 3.0
        %v360 = vmax.f32 %v356, 0.0
        %v361 = vmax.f32 %v357, 0.0
        %v362 = vmax.f32 %v358, 0.0
        %v363 = vmax.f32 %v359, 0.0
        %v364 = vmin.f32 %v360, 6.0
        %v365 = vmin.f32 %v361, 6.0
        %v366 = vmin.f32 %v362, 6.0
        %v367 = vmin.f32 %v363, 6.0
        %v368 = vmul.f32 %v352, %v364
        %v369 = vmul.f32 %v353, %v365
        %v370 = vmul.f32 %v354, %v366
        %v371 = vmul.f32 %v355, %v367
        %v372 = vmul.f32 %v368, 0.16666667
        %v373 = vmul.f32 %v369, 0.16666667
        %v374 = vmul.f32 %v370, 0.16666667
        %v375 = vmul.f32 %v371, 0.16666667
        %v376 = vpack.c.bf16 %v373, %v372
        %v377 = vpack.c.bf16 %v375, %v374
        %v380 = vunpack.c.l.b16 %v376
        %v381 = vunpack.c.h.b16 %v376
        %v382 = vunpack.c.l.b16 %v377
        %v383 = vunpack.c.h.b16 %v377
        %v384 = vpack.c.b16 %v380, %v380
        %v385 = vpack.c.b16 %v381, %v381
        %v386 = vpack.c.b16 %v382, %v382
        %v387 = vpack.c.b16 %v383, %v383
        %vm392 = vcmask 519168
        %393 = vst.msk [vmem:[%s212] sm:$0xf] %vm392, %v384
        %394 = vst.msk [vmem:[%s212 + $0x4] sm:$0xf] %vm392, %v385
        %395 = vst.msk [vmem:[%s212 + $0x8] sm:$0xf] %vm392, %v386
        %396 = vst.msk [vmem:[%s212 + $0xc] sm:$0xf] %vm392, %v387
        %s397 = sand.u32 %s131, 1
        %s398 = scalar_lea.sflag [#allocation3], %s397
        %s399 = sand.u32 %s131, 1
        %s400 = smul.addr %s399, 16
        %s401 = scalar_lea.vmem [#allocation2], %s400
        // Predicated region
        $region37: #{tpu_custom_call.1} parent=35 // pred_check
          %p402 = pneg %p141
        $region38: #{tpu_custom_call.1} parent=35 // pred_check_branch
          %404 = sbr.rel (%p402) target = $region40
        $region39: #{tpu_custom_call.1} parent=35 // pred_region
          %s406 = ssub.s32 256, 256
          %407 = vsyncadd %s398, %s406
          %s408 = smul.addr %s22, 4
          %s409 = sadd.s32 %s23, %s408
          %s410 = smul.addr %s409, 64
          %s411 = scalar_lea.hbm %s4, %s410
          %s412 = sshll.u32 %s401, 4
          %s413 = int_to_ptr.vmem [resolvable:$true] %s412
          %418 = dma.vmem_to_hbm [thread:$0]  %s413, 256, %s411, %s398, 64, 64, 4
        $region40: #{tpu_custom_call.1} parent=35 // pred_fallthru
          _
      $region36: #{tpu_custom_call.1} parent=5 // pred_fallthru
        _
      %p419 = scmp.le.s32.totalorder 2, %s13
      // Predicated region
      $region41: #{tpu_custom_call.1} parent=5 // pred_check
        %p420 = pneg %p419
      $region42: #{tpu_custom_call.1} parent=5 // pred_check_branch
        %422 = sbr.rel (%p420) target = $region44
      $region43: #{tpu_custom_call.1} parent=5 // pred_region
        %s423 = ssub.s32 %s13, 2
        // Predicated region
        $region45: #{tpu_custom_call.1} parent=43 // pred_check
          %p424 = pneg %p147
        $region46: #{tpu_custom_call.1} parent=43 // pred_check_branch
          %426 = sbr.rel (%p424) target = $region48
        $region47: #{tpu_custom_call.1} parent=43 // pred_region
          %s427 = sand.u32 %s132, 1
          %s428 = scalar_lea.sflag [#allocation3], %s427
          %s429 = sand.u32 %s132, 1
          %s430 = smul.addr %s429, 16
          %s431 = scalar_lea.vmem [#allocation2], %s430
          %432 = dma.done %s428, 256
        $region48: #{tpu_custom_call.1} parent=43 // pred_fallthru
          _
      $region44: #{tpu_custom_call.1} parent=5 // pred_fallthru
        _
    $region6: #{tpu_custom_call.1} parent=1 // loop_footer
      %s17 = sadd.s32 1, %s13
    $region7: #{tpu_custom_call.1} parent=1 // loop_footer_branch
      %12 = sbr.rel target = $region3
    $region8: #{tpu_custom_call.1} parent=1 // loop_exit
      _
    %433 = vsyncpa [#allocation3], 1
    %s434 = scalar_lea.sflag [#allocation3], 1
    %435 = vsyncpa %s434, 1

</llo_original>
